<compile_context>
chip_gen: v5e
topology: v5e:2x2
jax: 0.10.0
libtpu: 0.0.40
codegen_flags: <defaults>
</compile_context>

<pallas_src>
import jax
import jax.numpy as jnp
from jax.experimental import pallas as pl
from jax.experimental.pallas import tpu as pltpu


def _relu6(x):
    # F.relu6(x) == clamp(x, 0, 6)
    return jnp.minimum(jnp.maximum(x, 0.0), 6.0)


def _round_up(x, m):
    return ((x + m - 1) // m) * m


def _cdiv(a, b):
    return (a + b - 1) // b


# --------------------------------------------------------------------------
# Kernel
# --------------------------------------------------------------------------
def critic_kernel(s_ref, a_ref, w1s_ref, w1a_ref, b1_ref, w2_ref, b2_ref,
                  w3r_ref, b3_ref, o_ref):
    """Fused 3-layer MLP on one batch tile (weights resident across the grid)."""
    # Layer 1: cat([s, a]) @ W1 == s @ W1_s + a @ W1_a  (concat fused away).
    h1 = jnp.dot(s_ref[...], w1s_ref[...], preferred_element_type=jnp.float32)
    h1 = h1 + jnp.dot(a_ref[...], w1a_ref[...], preferred_element_type=jnp.float32)
    h1 = _relu6(h1 + b1_ref[...])                                   # f32 [tb, h]

    # Layer 2 (MXU, f32 accumulation; operand fed in the streamed dtype).
    h2 = jnp.dot(h1.astype(w2_ref.dtype), w2_ref[...],
                 preferred_element_type=jnp.float32)
    h2 = _relu6(h2 + b2_ref[...])                                   # f32 [tb, h]

    # Layer 3 (out_features == 1): f32 VPU multiply + lane (XLU) reduce; the
    # result is a 1-D lane-major vector, so the store below is a full-width
    # lane-dense vst into the (1, 1, tb) output slab (no masked [tb,1] stores).
    q = jnp.sum(h2 * w3r_ref[...], axis=-1) + b3_ref[0]             # f32 [tb]
    o_ref[...] = q.reshape(o_ref.shape).astype(o_ref.dtype)


# --------------------------------------------------------------------------
# Tiling / budget helpers
# --------------------------------------------------------------------------
def _chip_vmem_limit_bytes():
    """Chip-aware scoped-VMEM budget (v5e/v6e: 128 MiB physical, v7x: 64 MiB)."""
    try:
        kind = jax.devices()[0].device_kind.lower()
    except Exception:
        kind = ""
    if "v5" in kind or "v6" in kind:
        return 96 * 1024 * 1024
    return 40 * 1024 * 1024      # v7x (64 MiB physical) / unknown: conservative


def _padding_aware_max_tile(state_dim, action_dim, hidden, stream_bytes,
                            vmem_limit):
    """Largest batch tile whose VMEM footprint (with lane padding) fits budget.

    Every [tb, f <= 128] tile occupies tb * 128 * itemsize bytes in VMEM no
    matter how narrow the feature axis is, so the cap is derived per padded row.
    """
    pad = lambda n: _round_up(max(int(n), 1), 128)
    per_row = (
        2 * (pad(state_dim) + pad(action_dim)) * stream_bytes  # s/a, double-buffered
        + 2 * 4                                                 # lane-dense q slab (x2)
        + 2 * pad(hidden) * 4                                   # h1/h2 f32 intermediates
        + pad(hidden) * stream_bytes                            # low-precision copy of h1
    )
    budget = int(vmem_limit * 0.6)   # headroom for resident weights + scratch
    return max(8, min(16384, (budget // per_row) // 8 * 8))


def _choose_batch_tile(batch, tile_b, max_tb):
    """Pick a batch tile (multiple of 8).  Prefer an even tile count so a v7x
    megacore splits the 'parallel' batch grid evenly across its 2 TCs."""
    tb = max(8, _round_up(min(int(tile_b), max_tb, _round_up(batch, 8)), 8))
    nt = _cdiv(batch, tb)
    if nt > 1 and nt % 2 == 1:
        tb_even = _round_up(_cdiv(batch, nt + 1), 8)
        if _cdiv(batch, tb_even) % 2 == 0:
            tb, nt = tb_even, _cdiv(batch, tb_even)
    return tb, nt


# --------------------------------------------------------------------------
# Wrapper
# --------------------------------------------------------------------------
def critic_forward(s, a, params, *, tile_b=4096, compute_dtype=jnp.bfloat16):
    """Pallas-fused Critic forward.

    s: [B, state_dim], a: [B, action_dim]
    params (f32): w1_s [sd,h], w1_a [ad,h], b1 [1,h], w2 [h,h], b2 [1,h],
                  w3_row [1,h], b3 [1]
    compute_dtype: dtype used to stream s/a and the big weights (bf16 halves
                   HBM/VMEM traffic; accumulation is always f32 on the MXU).
    returns: [B, 1] f32
    """
    B, state_dim = s.shape
    _, action_dim = a.shape
    hidden = params["w2"].shape[0]

    compute_dtype = jnp.dtype(compute_dtype)
    stream_bytes = compute_dtype.itemsize

    # Streamed operands in compute_dtype; biases / w3 row stay f32 (tiny; bias,
    # relu6 and the final reduction are applied on the f32 accumulator).
    s_c = s.astype(compute_dtype)
    a_c = a.astype(compute_dtype)
    w1s = params["w1_s"].astype(compute_dtype)
    w1a = params["w1_a"].astype(compute_dtype)
    w2 = params["w2"].astype(compute_dtype)
    b1 = params["b1"].astype(jnp.float32)
    b2 = params["b2"].astype(jnp.float32)
    w3r = params["w3_row"].astype(jnp.float32)
    b3 = params["b3"].astype(jnp.float32)

    vmem_limit = _chip_vmem_limit_bytes()
    max_tb = _padding_aware_max_tile(state_dim, action_dim, hidden,
                                     stream_bytes, vmem_limit)
    tb, num_tiles = _choose_batch_tile(B, tile_b, max_tb)
    grid = (num_tiles,)

    # Weights / biases: full-extent blocks with a constant index -> VMEM-resident.
    # NOTE: for large hidden_dim these should be single-buffered
    # (pipeline_mode=pl.Buffered(1)) or DMA'd once into scratch; at h <= 128
    # they are a few KiB, so default double-buffering is irrelevant.
    resident = lambda arr: pl.BlockSpec(arr.shape, lambda i: (0,) * arr.ndim)

    flops = 2 * B * ((state_dim + action_dim) * hidden + hidden * hidden + hidden)
    bytes_accessed = (
        B * (state_dim + action_dim) * stream_bytes + B * 4
        + (state_dim + action_dim + hidden) * hidden * stream_bytes
        + (3 * hidden + 1) * 4
    )

    q_slab = pl.pallas_call(
        critic_kernel,
        out_shape=jax.ShapeDtypeStruct((num_tiles, 1, tb), jnp.float32),
        grid=grid,
        in_specs=[
            pl.BlockSpec((tb, state_dim), lambda i: (i, 0)),     # s tile
            pl.BlockSpec((tb, action_dim), lambda i: (i, 0)),    # a tile
            resident(w1s),
            resident(w1a),
            resident(b1),
            resident(w2),
            resident(b2),
            resident(w3r),
            pl.BlockSpec(memory_space=pltpu.MemorySpace.SMEM),   # b3 scalar
        ],
        # Lane-dense output slab: block last dim = tb -> full-width vector stores.
        out_specs=pl.BlockSpec((1, 1, tb), lambda i: (i, 0, 0)),
        compiler_params=pltpu.CompilerParams(
            dimension_semantics=("parallel",),   # batch tiles -> both TCs on v7x
            vmem_limit_bytes=vmem_limit,
        ),
        cost_estimate=pl.CostEstimate(flops=flops, transcendentals=0,
                                      bytes_accessed=bytes_accessed),
    )(s_c, a_c, w1s, w1a, b1, w2, b2, w3r, b3)

    # TODO(synk): a fully transposed (batch-on-lanes) formulation would make
    # every buffer lane-dense and allow 4-8x larger tiles, but only pays off if
    # s/a arrive pre-transposed upstream; keeping the module's [B, feat] API.
    return q_slab.reshape(num_tiles * tb)[:B].reshape(B, 1)


# --------------------------------------------------------------------------
# Params / reference
# --------------------------------------------------------------------------
def init_critic_params(key, state_dim, action_dim, hidden_dim):
    """Deterministic synthetic init; shapes mirror the nn.Linear layers,
    with W1 stored pre-split so the kernel never needs the concat."""
    input_dim = state_dim + action_dim
    k1, k2, k3, k4, k5, k6 = jax.random.split(key, 6)

    def lin(kw, kb, fan_in, fan_out):
        # PyTorch default Linear init: U(-1/sqrt(fan_in), 1/sqrt(fan_in))
        bound = 1.0 / jnp.sqrt(jnp.float32(fan_in))
        w = jax.random.uniform(kw, (fan_in, fan_out), jnp.float32, -bound, bound)
        b = jax.random.uniform(kb, (1, fan_out), jnp.float32, -bound, bound)
        return w, b

    w1, b1 = lin(k1, k2, input_dim, hidden_dim)
    w2, b2 = lin(k3, k4, hidden_dim, hidden_dim)
    w3, b3 = lin(k5, k6, hidden_dim, 1)
    return {
        "w1_s": w1[:state_dim],          # [state_dim, hidden]
        "w1_a": w1[state_dim:],          # [action_dim, hidden]
        "b1": b1,                        # [1, hidden]
        "w2": w2,                        # [hidden, hidden]
        "b2": b2,                        # [1, hidden]
        "w3_row": w3.T,                  # [1, hidden]
        "b3": b3.reshape((1,)),          # [1] scalar bias (SMEM)
    }


def critic_reference(s, a, params):
    """Pure-JAX f32 reference (identical math to the PyTorch module)."""
    h1 = jnp.clip(s @ params["w1_s"] + a @ params["w1_a"] + params["b1"], 0.0, 6.0)
    h2 = jnp.clip(h1 @ params["w2"] + params["b2"], 0.0, 6.0)
    return h2 @ params["w3_row"].T + params["b3"]


# --------------------------------------------------------------------------
# Self-test
# --------------------------------------------------------------------------
if __name__ == "__main__":
    key = jax.random.PRNGKey(0)
    k_s, k_a, k_p, k_s2, k_a2 = jax.random.split(key, 5)

    batch, state_dim, action_dim, hidden_dim = 2, 8, 4, 32

    s = jax.random.normal(k_s, (batch, state_dim), jnp.float32)
    a = jax.random.normal(k_a, (batch, action_dim), jnp.float32)
    params = init_critic_params(k_p, state_dim, action_dim, hidden_dim)
    q_ref = critic_reference(s, a, params)

    # f32-streamed path (tolerance covers TPU default matmul-precision rounding).
    q = jax.block_until_ready(critic_forward(s, a, params,
                                             compute_dtype=jnp.float32))
    assert q.shape == (batch, 1)
    assert jnp.allclose(q, q_ref, atol=1e-2, rtol=1e-2)

    # Default bf16-streamed path (f32 accumulation): looser tolerance.
    q_bf = jax.block_until_ready(critic_forward(s, a, params))
    assert q_bf.shape == (batch, 1)
    assert jnp.allclose(q_bf, q_ref, atol=5e-2, rtol=5e-2)

    # Multi-tile grid with a partial last tile (even tile count picked for v7x).
    big_b = 300
    s2 = jax.random.normal(k_s2, (big_b, state_dim), jnp.float32)
    a2 = jax.random.normal(k_a2, (big_b, action_dim), jnp.float32)
    q2 = jax.block_until_ready(critic_forward(s2, a2, params, tile_b=128,
                                              compute_dtype=jnp.float32))
    q2_ref = critic_reference(s2, a2, params)
    assert q2.shape == (big_b, 1)
    assert jnp.allclose(q2, q2_ref, atol=1e-2, rtol=1e-2)

    print("KERNEL_OK")
</pallas_src>

<mosaic_0001>
module attributes {stable_mosaic.version = 11 : i64} {
  func.func @critic_kernel(%arg0: i32, %arg1: memref<8x8xf32, #tpu.memory_space<vmem>>, %arg2: memref<8x4xf32, #tpu.memory_space<vmem>>, %arg3: memref<8x32xf32, #tpu.memory_space<vmem>>, %arg4: memref<4x32xf32, #tpu.memory_space<vmem>>, %arg5: memref<1x32xf32, #tpu.memory_space<vmem>>, %arg6: memref<32x32xf32, #tpu.memory_space<vmem>>, %arg7: memref<1x32xf32, #tpu.memory_space<vmem>>, %arg8: memref<1x32xf32, #tpu.memory_space<vmem>>, %arg9: memref<1xf32, #tpu.memory_space<smem>>, %arg10: memref<1x1x8xf32, #tpu.memory_space<vmem>>) attributes {dimension_semantics = [#tpu.dimension_semantics<parallel>], iteration_bounds = array<i64: 1>, scalar_prefetch = 0 : i64, scratch_operands = 0 : i64, tpu.core_type = #tpu.core_type<tc>, window_params = [{transform_indices = @transform_0, window_bounds = array<i64: 8, 8>}, {transform_indices = @transform_1, window_bounds = array<i64: 8, 4>}, {pipeline_mode = #tpu.pipeline_mode<synchronous>, transform_indices = @transform_2, window_bounds = array<i64: 8, 32>}, {pipeline_mode = #tpu.pipeline_mode<synchronous>, transform_indices = @transform_3, window_bounds = array<i64: 4, 32>}, {pipeline_mode = #tpu.pipeline_mode<synchronous>, transform_indices = @transform_4, window_bounds = array<i64: 1, 32>}, {pipeline_mode = #tpu.pipeline_mode<synchronous>, transform_indices = @transform_5, window_bounds = array<i64: 32, 32>}, {pipeline_mode = #tpu.pipeline_mode<synchronous>, transform_indices = @transform_6, window_bounds = array<i64: 1, 32>}, {pipeline_mode = #tpu.pipeline_mode<synchronous>, transform_indices = @transform_7, window_bounds = array<i64: 1, 32>}, {transform_indices = @transform_8, window_bounds = array<i64: 1>}, {transform_indices = @transform_9, window_bounds = array<i64: 1, 1, 8>}]} {
    %c0 = arith.constant 0 : index
    %c0_0 = arith.constant 0 : index
    %0 = vector.load %arg1[%c0, %c0_0] : memref<8x8xf32, #tpu.memory_space<vmem>>, vector<8x8xf32>
    %c0_1 = arith.constant 0 : index
    %c0_2 = arith.constant 0 : index
    %1 = vector.load %arg3[%c0_1, %c0_2] : memref<8x32xf32, #tpu.memory_space<vmem>>, vector<8x32xf32>
    %cst = arith.constant dense<0.000000e+00> : vector<8x32xf32>
    %2 = tpu.matmul %0, %1, %cst {dimension_numbers = #tpu.dot_dimension_numbers<[1], [0], [0], [1], [0, 0, 1, 1], [], []>} : vector<8x8xf32>, vector<8x32xf32>, vector<8x32xf32> -> vector<8x32xf32>
    %c0_3 = arith.constant 0 : index
    %c0_4 = arith.constant 0 : index
    %3 = vector.load %arg2[%c0_3, %c0_4] : memref<8x4xf32, #tpu.memory_space<vmem>>, vector<8x4xf32>
    %c0_5 = arith.constant 0 : index
    %c0_6 = arith.constant 0 : index
    %4 = vector.load %arg4[%c0_5, %c0_6] : memref<4x32xf32, #tpu.memory_space<vmem>>, vector<4x32xf32>
    %cst_7 = arith.constant dense<0.000000e+00> : vector<8x32xf32>
    %5 = tpu.matmul %3, %4, %cst_7 {dimension_numbers = #tpu.dot_dimension_numbers<[1], [0], [0], [1], [0, 0, 1, 1], [], []>} : vector<8x4xf32>, vector<4x32xf32>, vector<8x32xf32> -> vector<8x32xf32>
    %6 = arith.addf %2, %5 : vector<8x32xf32>
    %c0_8 = arith.constant 0 : index
    %c0_9 = arith.constant 0 : index
    %7 = vector.load %arg5[%c0_8, %c0_9] : memref<1x32xf32, #tpu.memory_space<vmem>>, vector<1x32xf32>
    %8 = vector.broadcast %7 : vector<1x32xf32> to vector<8x32xf32>
    %9 = arith.addf %6, %8 : vector<8x32xf32>
    %cst_10 = arith.constant 0.000000e+00 : f32
    %10 = vector.broadcast %cst_10 : f32 to vector<8x32xf32>
    %11 = arith.maximumf %9, %10 : vector<8x32xf32>
    %cst_11 = arith.constant 6.000000e+00 : f32
    %12 = vector.broadcast %cst_11 : f32 to vector<8x32xf32>
    %13 = arith.minimumf %11, %12 : vector<8x32xf32>
    %c0_12 = arith.constant 0 : index
    %c0_13 = arith.constant 0 : index
    %14 = vector.load %arg6[%c0_12, %c0_13] : memref<32x32xf32, #tpu.memory_space<vmem>>, vector<32x32xf32>
    %cst_14 = arith.constant dense<0.000000e+00> : vector<8x32xf32>
    %15 = tpu.matmul %13, %14, %cst_14 {dimension_numbers = #tpu.dot_dimension_numbers<[1], [0], [0], [1], [0, 0, 1, 1], [], []>} : vector<8x32xf32>, vector<32x32xf32>, vector<8x32xf32> -> vector<8x32xf32>
    %c0_15 = arith.constant 0 : index
    %c0_16 = arith.constant 0 : index
    %16 = vector.load %arg7[%c0_15, %c0_16] : memref<1x32xf32, #tpu.memory_space<vmem>>, vector<1x32xf32>
    %17 = vector.broadcast %16 : vector<1x32xf32> to vector<8x32xf32>
    %18 = arith.addf %15, %17 : vector<8x32xf32>
    %cst_17 = arith.constant 0.000000e+00 : f32
    %19 = vector.broadcast %cst_17 : f32 to vector<8x32xf32>
    %20 = arith.maximumf %18, %19 : vector<8x32xf32>
    %cst_18 = arith.constant 6.000000e+00 : f32
    %21 = vector.broadcast %cst_18 : f32 to vector<8x32xf32>
    %22 = arith.minimumf %20, %21 : vector<8x32xf32>
    %c0_19 = arith.constant 0 : index
    %c0_20 = arith.constant 0 : index
    %23 = vector.load %arg8[%c0_19, %c0_20] : memref<1x32xf32, #tpu.memory_space<vmem>>, vector<1x32xf32>
    %24 = vector.broadcast %23 : vector<1x32xf32> to vector<8x32xf32>
    %25 = arith.mulf %22, %24 : vector<8x32xf32>
    %cst_21 = arith.constant dense<0.000000e+00> : vector<8xf32>
    %26 = vector.multi_reduction <add>, %25, %cst_21 [1] : vector<8x32xf32> to vector<8xf32>
    %c0_22 = arith.constant 0 : index
    %27 = memref.load %arg9[%c0_22] : memref<1xf32, #tpu.memory_space<smem>>
    %28 = vector.broadcast %27 : f32 to vector<8xf32>
    %29 = arith.addf %26, %28 : vector<8xf32>
    %30 = vector.shape_cast %29 : vector<8xf32> to vector<1x1x8xf32>
    %c0_23 = arith.constant 0 : index
    %c0_24 = arith.constant 0 : index
    %c0_25 = arith.constant 0 : index
    %31 = vector.load %arg10[%c0_23, %c0_24, %c0_25] : memref<1x1x8xf32, #tpu.memory_space<vmem>>, vector<1x1x8xf32>
    tpu.vector_store %arg10[%c0_23, %c0_24, %c0_25], %30 {strides = array<i32>} : memref<1x1x8xf32, #tpu.memory_space<vmem>>, vector<1x1x8xf32>,
    return
  }
  func.func @transform_0(%arg0: i32) -> (i32, i32) {
    %c0_i32 = arith.constant 0 : i32
    %c0_i32_0 = arith.constant 0 : i32
    return %arg0, %c0_i32 : i32, i32
  }
  func.func @transform_1(%arg0: i32) -> (i32, i32) {
    %c0_i32 = arith.constant 0 : i32
    %c0_i32_0 = arith.constant 0 : i32
    return %arg0, %c0_i32 : i32, i32
  }
  func.func @transform_2(%arg0: i32) -> (i32, i32) {
    %c0_i32 = arith.constant 0 : i32
    %c0_i32_0 = arith.constant 0 : i32
    %c0_i32_1 = arith.constant 0 : i32
    return %c0_i32, %c0_i32_0 : i32, i32
  }
  func.func @transform_3(%arg0: i32) -> (i32, i32) {
    %c0_i32 = arith.constant 0 : i32
    %c0_i32_0 = arith.constant 0 : i32
    %c0_i32_1 = arith.constant 0 : i32
    return %c0_i32, %c0_i32_0 : i32, i32
  }
  func.func @transform_4(%arg0: i32) -> (i32, i32) {
    %c0_i32 = arith.constant 0 : i32
    %c0_i32_0 = arith.constant 0 : i32
    %c0_i32_1 = arith.constant 0 : i32
    return %c0_i32, %c0_i32_0 : i32, i32
  }
  func.func @transform_5(%arg0: i32) -> (i32, i32) {
    %c0_i32 = arith.constant 0 : i32
    %c0_i32_0 = arith.constant 0 : i32
    %c0_i32_1 = arith.constant 0 : i32
    return %c0_i32, %c0_i32_0 : i32, i32
  }
  func.func @transform_6(%arg0: i32) -> (i32, i32) {
    %c0_i32 = arith.constant 0 : i32
    %c0_i32_0 = arith.constant 0 : i32
    %c0_i32_1 = arith.constant 0 : i32
    return %c0_i32, %c0_i32_0 : i32, i32
  }
  func.func @transform_7(%arg0: i32) -> (i32, i32) {
    %c0_i32 = arith.constant 0 : i32
    %c0_i32_0 = arith.constant 0 : i32
    %c0_i32_1 = arith.constant 0 : i32
    return %c0_i32, %c0_i32_0 : i32, i32
  }
  func.func @transform_8(%arg0: i32) -> i32 {
    %c0_i32 = arith.constant 0 : i32
    %c0_i32_0 = arith.constant 0 : i32
    return %c0_i32 : i32
  }
  func.func @transform_9(%arg0: i32) -> (i32, i32, i32) {
    %c0_i32 = arith.constant 0 : i32
    %c0_i32_0 = arith.constant 0 : i32
    %c0_i32_1 = arith.constant 0 : i32
    return %arg0, %c0_i32, %c0_i32_0 : i32, i32, i32
  }
}

</mosaic_0001>

<llo_original>
// kernel: tpu_custom_call.1
$region0: #{tpu_custom_call.1}
  #allocation0 [shape = 'u32[]', space=smem, size = 0x4, offset = 0x4, fixed_abs, tag = 'smem constant byte address 0x4 - core index']
  #allocation1 [shape = 'u32[72,128]{1,0:T(1,128)}', space=vmem, size = 0x9000, scoped, tag = 'internal scratch']
  #allocation2 [shape = 'f32[1]{0:T(128)S(6)}', space=smem, size = 0x200, scoped, tag = 'scoped memory for tpu_custom_call.1']
  %s0 = inlined_call_operand.hbm [shape: f32[2,8], index: 0, kind: input, shape index: {}]
  %s1 = inlined_call_operand.hbm [shape: f32[2,4], index: 1, kind: input, shape index: {}]
  %s2 = inlined_call_operand.hbm [shape: f32[8,32], index: 2, kind: input, shape index: {}]
  %s3 = inlined_call_operand.vmem [shape: f32[4,32], index: 3, kind: input, shape index: {}]
  %s4 = inlined_call_operand.vmem [shape: f32[1,32], index: 4, kind: input, shape index: {}]
  %s5 = inlined_call_operand.hbm [shape: f32[32,32], index: 5, kind: input, shape index: {}]
  %s6 = inlined_call_operand.vmem [shape: f32[1,32], index: 6, kind: input, shape index: {}]
  %s7 = inlined_call_operand.vmem [shape: f32[1,32], index: 7, kind: input, shape index: {}]
  %s8 = inlined_call_operand.<no memory space> [shape: f32[1], index: 8, kind: input, shape index: {}]
  %s9 = inlined_call_operand.hbm [shape: f32[1,1,8], index: 9, kind: output, shape index: {}]
  %s10 = sld [smem:[#allocation0]]
  $region62: #{tpu_custom_call.1} parent=0
    _
  %s12 = ssub.s32 1, %s10
  %s13 = scalar_select 0, %s12, %s10
  %14 = sst [smem:[#allocation2]] %s8
  $region1: #{tpu_custom_call.1} parent=0
    #allocation3 [shape = 'u8[4096]{0}', space=vmem, size = 0x1000, scoped, tag = 'input window, operand 0, single buffered']
    #allocation4 [shape = 's32[1]{0}', space=sflag, size = 0x4, scoped, tag = 'scoped memory for tpu_custom_call.1']
    #allocation5 [shape = 's32[1]{0}', space=sflag, size = 0x4, scoped, tag = 'scoped memory for tpu_custom_call.1']
    #allocation6 [shape = 'u8[4096]{0}', space=vmem, size = 0x1000, scoped, tag = 'input window, operand 1, single buffered']
    #allocation7 [shape = 's32[1]{0}', space=sflag, size = 0x4, scoped, tag = 'scoped memory for tpu_custom_call.1']
    #allocation8 [shape = 'u8[4096]{0}', space=vmem, size = 0x1000, scoped, tag = 'input window, operand 2, single buffered']
    #allocation9 [shape = 'u8[16384]{0}', space=vmem, size = 0x4000, scoped, tag = 'input window, operand 5, single buffered']
    #allocation10 [shape = 's32[1]{0}', space=sflag, size = 0x4, scoped, tag = 'scoped memory for tpu_custom_call.1']
    #allocation11 [shape = 'u8[512]{0}', space=vmem, size = 0x400, scoped, tag = 'output window, operand 0, single buffered']
    %15 = vsyncpa [#allocation4], 0
    %16 = vsyncpa [#allocation7], 0
    %17 = vsyncpa [#allocation10], 0
    %18 = vsyncpa [#allocation5], 0
    // Predicated region
    $region2: #{tpu_custom_call.1} parent=1 // pred_check
      _
    $region3: #{tpu_custom_call.1} parent=1 // pred_check_branch
      %20 = sbr.rel (0) target = $region5
    $region4: #{tpu_custom_call.1} parent=1 // pred_region
      %22 = vsyncadd [#allocation4], 96
      %s23 = sshll.u32 %s0, 4
      %s24 = int_to_ptr.hbm [resolvable:$true] %s23
      %s25 = sshll.u32 [#allocation3], 4
      %s26 = int_to_ptr.vmem [resolvable:$true] %s25
      %31 = dma.hbm_to_vmem [thread:$0]  %s24, 32, %s26, [#allocation4], 32, 32, 2
    $region5: #{tpu_custom_call.1} parent=1 // pred_fallthru
      _
    // Predicated region
    $region6: #{tpu_custom_call.1} parent=1 // pred_check
      _
    $region7: #{tpu_custom_call.1} parent=1 // pred_check_branch
      %33 = sbr.rel (0) target = $region9
    $region8: #{tpu_custom_call.1} parent=1 // pred_region
      %35 = vsyncadd [#allocation7], 96
      %s36 = sshll.u32 %s1, 4
      %s37 = int_to_ptr.hbm [resolvable:$true] %s36
      %s38 = sshll.u32 [#allocation6], 4
      %s39 = int_to_ptr.vmem [resolvable:$true] %s38
      %44 = dma.hbm_to_vmem [thread:$0]  %s37, 32, %s39, [#allocation7], 32, 32, 2
    $region9: #{tpu_custom_call.1} parent=1 // pred_fallthru
      _
    // Predicated region
    $region10: #{tpu_custom_call.1} parent=1 // pred_check
      _
    $region11: #{tpu_custom_call.1} parent=1 // pred_check_branch
      %46 = sbr.rel (0) target = $region13
    $region12: #{tpu_custom_call.1} parent=1 // pred_region
      %48 = vsyncadd [#allocation7], 0
      %s50 = sshll.u32 %s2, 4
      %s51 = int_to_ptr.hbm [resolvable:$true] %s50
      %s52 = sshll.u32 [#allocation8], 4
      %s53 = int_to_ptr.vmem [resolvable:$true] %s52
      %55 = dma.hbm_to_vmem [thread:$0]  %s51, 128, %s53, [#allocation7]
    $region13: #{tpu_custom_call.1} parent=1 // pred_fallthru
      _
    // Predicated region
    $region14: #{tpu_custom_call.1} parent=1 // pred_check
      _
    $region15: #{tpu_custom_call.1} parent=1 // pred_check_branch
      %57 = sbr.rel (0) target = $region17
    $region16: #{tpu_custom_call.1} parent=1 // pred_region
      _
    $region17: #{tpu_custom_call.1} parent=1 // pred_fallthru
      _
    // Predicated region
    $region18: #{tpu_custom_call.1} parent=1 // pred_check
      _
    $region19: #{tpu_custom_call.1} parent=1 // pred_check_branch
      %59 = sbr.rel (0) target = $region21
    $region20: #{tpu_custom_call.1} parent=1 // pred_region
      _
    $region21: #{tpu_custom_call.1} parent=1 // pred_fallthru
      _
    // Predicated region
    $region22: #{tpu_custom_call.1} parent=1 // pred_check
      _
    $region23: #{tpu_custom_call.1} parent=1 // pred_check_branch
      %61 = sbr.rel (0) target = $region25
    $region24: #{tpu_custom_call.1} parent=1 // pred_region
      %63 = vsyncadd [#allocation10], 0
      %s64 = sshll.u32 %s5, 4
      %s65 = int_to_ptr.hbm [resolvable:$true] %s64
      %s66 = sshll.u32 [#allocation9], 4
      %s67 = int_to_ptr.vmem [resolvable:$true] %s66
      %72 = dma.hbm_to_vmem [thread:$0]  %s65, 512, %s67, [#allocation10], 128, 128, 8
    $region25: #{tpu_custom_call.1} parent=1 // pred_fallthru
      _
    // Predicated region
    $region26: #{tpu_custom_call.1} parent=1 // pred_check
      _
    $region27: #{tpu_custom_call.1} parent=1 // pred_check_branch
      %74 = sbr.rel (0) target = $region29
    $region28: #{tpu_custom_call.1} parent=1 // pred_region
      _
    $region29: #{tpu_custom_call.1} parent=1 // pred_fallthru
      _
    // Predicated region
    $region30: #{tpu_custom_call.1} parent=1 // pred_check
      _
    $region31: #{tpu_custom_call.1} parent=1 // pred_check_branch
      %76 = sbr.rel (0) target = $region33
    $region32: #{tpu_custom_call.1} parent=1 // pred_region
      _
    $region33: #{tpu_custom_call.1} parent=1 // pred_fallthru
      _
    // Predicated region
    $region34: #{tpu_custom_call.1} parent=1 // pred_check
      _
    $region35: #{tpu_custom_call.1} parent=1 // pred_check_branch
      %78 = sbr.rel (0) target = $region37
    $region36: #{tpu_custom_call.1} parent=1 // pred_region
      _
    $region37: #{tpu_custom_call.1} parent=1 // pred_fallthru
      _
    // Predicated region
    $region38: #{tpu_custom_call.1} parent=1 // pred_check
      _
    $region39: #{tpu_custom_call.1} parent=1 // pred_check_branch
      %80 = sbr.rel (0) target = $region41
    $region40: #{tpu_custom_call.1} parent=1 // pred_region
      %82 = dma.done [#allocation4], 128
    $region41: #{tpu_custom_call.1} parent=1 // pred_fallthru
      _
    // Predicated region
    $region42: #{tpu_custom_call.1} parent=1 // pred_check
      _
    $region43: #{tpu_custom_call.1} parent=1 // pred_check_branch
      %84 = sbr.rel (0) target = $region45
    $region44: #{tpu_custom_call.1} parent=1 // pred_region
      %86 = dma.done [#allocation7], 128
    $region45: #{tpu_custom_call.1} parent=1 // pred_fallthru
      _
    // Predicated region
    $region46: #{tpu_custom_call.1} parent=1 // pred_check
      _
    $region47: #{tpu_custom_call.1} parent=1 // pred_check_branch
      %88 = sbr.rel (0) target = $region49
    $region48: #{tpu_custom_call.1} parent=1 // pred_region
      %90 = dma.done [#allocation7], 128
    $region49: #{tpu_custom_call.1} parent=1 // pred_fallthru
      _
    // Predicated region
    $region50: #{tpu_custom_call.1} parent=1 // pred_check
      _
    $region51: #{tpu_custom_call.1} parent=1 // pred_check_branch
      %92 = sbr.rel (0) target = $region53
    $region52: #{tpu_custom_call.1} parent=1 // pred_region
      %94 = dma.done [#allocation10], 512
    $region53: #{tpu_custom_call.1} parent=1 // pred_fallthru
      _
    %v95 = vld [vmem:[#allocation3] sm:$0xff]
    %v96 = vld [vmem:[#allocation8] sm:$0xff]
    %v97 = vld [vmem:[#allocation6] sm:$0xff]
    %v98 = vld [vmem:[%s3] sm:$0xf]
    %vm99 = vcmask 31744
    %v101 = vsel %vm99, %v97, 0
    %vm103 = vcmask 1043456
    %v105 = vsel %vm103, %v98, 0
    %107 = vmatpush.msra.mxu0 0.0
    %108 = vmatpush.msra.mxu0 0.0
    %109 = vmatpush.msra.mxu0 0.0
    %110 = vmatpush.msra.mxu0 0.0
    %111 = vmatpush.msra.mxu0 0.0
    %112 = vmatpush.msra.mxu0 0.0
    %113 = vmatpush.msra.mxu0 0.0
    %114 = vmatpush.msra.mxu0 0.0
    %115 = vmatpush.msra.mxu0 0.0
    %116 = vmatpush.msra.mxu0 0.0
    %117 = vmatpush.msra.mxu0 0.0
    %118 = vmatpush.msra.mxu0 0.0
    %119 = vmatpush.msra.mxu0 0.0
    %120 = vmatpush.msra.mxu0 0.0
    %121 = vmatpush.msra.mxu0 0.0
    %122 = vmatpush.msra.mxu0 %v105
    %123 = vmatmul.f32.gmra.mxu0 %v101
    %v124 = vpop.f32.mrf.mxu0
    %v125 = vadd.f32 0.0, %v124
    %126 = vdwg.mxu0
    %vm127 = vcmask 64512
    %v129 = vsel %vm127, %v95, 0
    %131 = vmatpush.msra.mxu0 0.0
    %132 = vmatpush.msra.mxu0 0.0
    %133 = vmatpush.msra.mxu0 0.0
    %134 = vmatpush.msra.mxu0 0.0
    %135 = vmatpush.msra.mxu0 0.0
    %136 = vmatpush.msra.mxu0 0.0
    %137 = vmatpush.msra.mxu0 0.0
    %138 = vmatpush.msra.mxu0 0.0
    %139 = vmatpush.msra.mxu0 0.0
    %140 = vmatpush.msra.mxu0 0.0
    %141 = vmatpush.msra.mxu0 0.0
    %142 = vmatpush.msra.mxu0 0.0
    %143 = vmatpush.msra.mxu0 0.0
    %144 = vmatpush.msra.mxu0 0.0
    %145 = vmatpush.msra.mxu0 0.0
    %146 = vmatpush.msra.mxu0 %v96
    %147 = vmatmul.f32.gmra.mxu0 %v129
    %v148 = vpop.f32.mrf.mxu0
    %v149 = vadd.f32 %v125, %v148
    %150 = vdwg.mxu0
    %v151 = vld [vmem:[%s4] sm:$0x1]
    %v153 = vperm.slane %v151, 0
    %v155 = vadd.f32 %v149, %v153
    %v156 = vmax.f32 %v155, 0.0
    %v157 = vmin.f32 %v156, 6.0
    %v158 = vld [vmem:[#allocation9] sm:$0xff]
    %v159 = vld [vmem:[#allocation9 + $0x8] sm:$0xff]
    %v160 = vld [vmem:[#allocation9 + $0x10] sm:$0xff]
    %v161 = vld [vmem:[#allocation9 + $0x18] sm:$0xff]
    %v162 = vld [vmem:[%s6] sm:$0x1]
    %v164 = vperm.slane %v162, 0
    %vm166 = vcmask 261120
    %v168 = vsel %vm166, %v157, 0
    %170 = vmatpush.msra.mxu0 0.0
    %171 = vmatpush.msra.mxu0 0.0
    %172 = vmatpush.msra.mxu0 0.0
    %173 = vmatpush.msra.mxu0 0.0
    %174 = vmatpush.msra.mxu0 0.0
    %175 = vmatpush.msra.mxu0 0.0
    %176 = vmatpush.msra.mxu0 0.0
    %177 = vmatpush.msra.mxu0 0.0
    %178 = vmatpush.msra.mxu0 0.0
    %179 = vmatpush.msra.mxu0 0.0
    %180 = vmatpush.msra.mxu0 0.0
    %181 = vmatpush.msra.mxu0 0.0
    %182 = vmatpush.msra.mxu0 %v161
    %183 = vmatpush.msra.mxu0 %v160
    %184 = vmatpush.msra.mxu0 %v159
    %185 = vmatpush.msra.mxu0 %v158
    %186 = vmatmul.f32.gmra.mxu0 %v168
    %v187 = vpop.f32.mrf.mxu0
    %v188 = vadd.f32 %v164, %v187
    %189 = vdwg.mxu0
    %v190 = vmax.f32 %v188, 0.0
    %v191 = vmin.f32 %v190, 6.0
    %v192 = vld [vmem:[%s7] sm:$0x1]
    %v194 = vperm.slane %v192, 0
    %v196 = vmul.f32 %v191, %v194
    %v197 = vsel %vm166, %v196, 0.0
    %198 = vadd.xlane.f32.xlu0 %v197
    %v199 = vpop.xlane.xlu0 %198
    %s200 = sld [smem:[#allocation2]]
    %v201 = vstv %s200
    %v202 = vadd.f32 %v199, %v201
    %v204 = vlaneseq
    %v205 = vand.u32 %v204, 127
    %v206 = vperm.slane %v202, %v205
    %vm208 = vcmask 57344
    %209 = vst.msk [vmem:[#allocation11] sm:$0x1] %vm208, %v206
    // Predicated region
    $region54: #{tpu_custom_call.1} parent=1 // pred_check
      _
    $region55: #{tpu_custom_call.1} parent=1 // pred_check_branch
      %211 = sbr.rel (0) target = $region57
    $region56: #{tpu_custom_call.1} parent=1 // pred_region
      %213 = vsyncadd [#allocation5], 0
      %s215 = sshll.u32 [#allocation11], 4
      %s216 = int_to_ptr.vmem [resolvable:$true] %s215
      %s217 = sshll.u32 %s9, 4
      %s218 = int_to_ptr.hbm [resolvable:$true] %s217
      %220 = dma.vmem_to_hbm [thread:$0]  %s216, 16, %s218, [#allocation5]
    $region57: #{tpu_custom_call.1} parent=1 // pred_fallthru
      _
    // Predicated region
    $region58: #{tpu_custom_call.1} parent=1 // pred_check
      _
    $region59: #{tpu_custom_call.1} parent=1 // pred_check_branch
      %222 = sbr.rel (0) target = $region61
    $region60: #{tpu_custom_call.1} parent=1 // pred_region
      %224 = dma.done [#allocation5], 16
    $region61: #{tpu_custom_call.1} parent=1 // pred_fallthru
      _
    %225 = vsyncpa [#allocation4], 1
    %226 = vsyncpa [#allocation7], 1
    %227 = vsyncpa [#allocation10], 1
    %228 = vsyncpa [#allocation5], 1

</llo_original>
